<compile_context>
chip_gen: v5e
topology: v5e:2x2
jax: 0.10.0
libtpu: 0.0.40
codegen_flags: <defaults>
</compile_context>

<pallas_src>
import math
import numpy as np
import jax
import jax.numpy as jnp
from jax import lax
from jax.experimental import pallas as pl
from jax.experimental.pallas import tpu as pltpu

N_SAMPLED_PSEUDO_WAV = 2


# ---------------------------------------------------------------------------
# deterministic parameter / buffer construction (numpy, no checkpoint loading)
# ---------------------------------------------------------------------------
def hann_window(win_length):
    # torch.hann_window(win, periodic=True)
    n = np.arange(win_length, dtype=np.float64)
    return (0.5 - 0.5 * np.cos(2.0 * np.pi * n / win_length)).astype(np.float32)


def melscale_fbanks(n_freqs, n_mels, sample_rate, f_min=0.0, f_max=None):
    # torchaudio.functional.melscale_fbanks, norm=None, mel_scale='htk'
    f_max = f_max if f_max is not None else sample_rate / 2.0
    all_freqs = np.linspace(0.0, sample_rate // 2, n_freqs)

    def hz_to_mel(f):
        return 2595.0 * np.log10(1.0 + f / 700.0)

    def mel_to_hz(m):
        return 700.0 * (10.0 ** (m / 2595.0) - 1.0)

    m_pts = np.linspace(hz_to_mel(f_min), hz_to_mel(f_max), n_mels + 2)
    f_pts = mel_to_hz(m_pts)
    f_diff = f_pts[1:] - f_pts[:-1]
    slopes = f_pts[None, :] - all_freqs[:, None]
    down = -slopes[:, :-2] / f_diff[:-1]
    up = slopes[:, 2:] / f_diff[1:]
    fb = np.maximum(0.0, np.minimum(down, up))
    return fb.astype(np.float32)  # (n_freqs, n_mels)


def create_dct(n_mfcc, n_mels):
    # torchaudio.functional.create_dct, norm='ortho'
    n = np.arange(n_mels, dtype=np.float64)
    k = np.arange(n_mfcc, dtype=np.float64)[:, None]
    dct = np.cos(np.pi / n_mels * (n + 0.5) * k)           # (n_mfcc, n_mels)
    dct[0] *= 1.0 / math.sqrt(2.0)
    dct *= math.sqrt(2.0 / n_mels)
    return dct.T.astype(np.float32)                         # (n_mels, n_mfcc)


def build_fused_weights(n_fft, n_freq, window, mel_fb, mel_fb_mfcc, dct_mat,
                        out_h, off_pow, off_mel, off_mfcc):
    """Fold sublane placement into three weight matrices (feat x time layout)."""
    n_mels = mel_fb.shape[1]
    n_mels_mfcc = mel_fb_mfcc.shape[1]
    n_mfcc = dct_mat.shape[1]

    # W1: windowed DFT (window zero-padded / centered to n_fft, like torch.stft)
    w = np.zeros(n_fft, dtype=np.float64)
    left = (n_fft - len(window)) // 2
    w[left:left + len(window)] = window
    n = np.arange(n_fft, dtype=np.float64)[None, :]
    k = np.arange(n_freq, dtype=np.float64)[:, None]
    ang = 2.0 * np.pi * n * k / n_fft
    w1 = np.zeros((out_h, n_fft), dtype=np.float64)
    w1[0:n_freq] = np.cos(ang) * w[None, :]                 # real rows 0..n_freq-1
    w1[n_freq:2 * n_freq] = -np.sin(ang) * w[None, :]       # imag rows n_freq..2n_freq-1

    # W2: acts on sq = spec * spec
    w2 = np.zeros((out_h, out_h), dtype=np.float64)
    idx = np.arange(n_freq)
    w2[off_pow + idx, idx] = 1.0                            # power = real^2 ...
    w2[off_pow + idx, n_freq + idx] = 1.0                   #         + imag^2
    w2[off_mel:off_mel + n_mels, 0:n_freq] = mel_fb.T
    w2[off_mel:off_mel + n_mels, n_freq:2 * n_freq] = mel_fb.T
    # MFCC-internal mel bank lives in rows 0..n_mels_mfcc-1 (intermediate only,
    # masked out of the final packed output by the row-select in the kernel)
    w2[0:n_mels_mfcc, 0:n_freq] = mel_fb_mfcc.T
    w2[0:n_mels_mfcc, n_freq:2 * n_freq] = mel_fb_mfcc.T

    # W3: DCT placed at its final output rows; applied to log(internal mel)
    w3 = np.zeros((out_h, n_mels_mfcc), dtype=np.float64)
    w3[off_mfcc:off_mfcc + n_mfcc, :] = dct_mat.T

    return w1.astype(np.float32), w2.astype(np.float32), w3.astype(np.float32)


# ---------------------------------------------------------------------------
# Pallas kernel: fused windowed DFT + power + mel + log-mel MFCC (feat x time)
# ---------------------------------------------------------------------------
def _make_feature_kernel(off_pow, n_mels_mfcc, log_eps=1e-6):
    def kernel(x_ref, w1_ref, w2_ref, w3_ref, out_ref):
        x = x_ref[0]                                                           # (n_fft, ft)
        spec = jnp.dot(w1_ref[...], x, preferred_element_type=jnp.float32)     # real|imag rows
        sq = spec * spec
        stage2 = jnp.dot(w2_ref[...], sq, preferred_element_type=jnp.float32)  # mel_mfcc|power|mel
        # rows 0..n_mels_mfcc-1 of stage2 hold the MFCC-internal mel (intermediate only)
        logm = jnp.log(stage2[:n_mels_mfcc, :] + log_eps)                      # (n_mels_mfcc, ft)
        mfcc = jnp.dot(w3_ref[...], logm, preferred_element_type=jnp.float32)  # nonzero at mfcc rows
        row = lax.broadcasted_iota(jnp.int32, spec.shape, 0)
        # rows < off_pow come from spec (real|imag); rows >= off_pow from stage2 (power|mel);
        # mfcc rows are zero in both -> one select + one add, no lane/sublane rotates.
        out_ref[0] = jnp.where(row < off_pow, spec, stage2) + mfcc
    return kernel


def run_stft_features(frames, w1, w2, w3, n_mels_mfcc, off_pow, frame_tile=2048):
    """frames: (S, n_fft, n_frames) f32 -> (S, out_h, n_frames) packed feature rows."""
    S, n_fft, F = frames.shape
    out_h = w1.shape[0]

    if F >= 128:
        ft = min(frame_tile, (F // 128) * 128)               # lane-aligned frame tile
        if S * pl.cdiv(F, ft) < 2 and F >= 256:
            ft = max(128, (F // 2 // 128) * 128)              # keep >=2 steps for v7x's 2 cores
    else:
        ft = F                                                # block == full dim (lane rule)
    n_fb = pl.cdiv(F, ft)

    kernel = _make_feature_kernel(off_pow, n_mels_mfcc)

    n_dct_in = w3.shape[1]
    cost = pl.CostEstimate(
        flops=2 * S * F * out_h * (n_fft + out_h + n_dct_in),
        transcendentals=S * F * n_dct_in,
        bytes_accessed=4 * (S * F * (n_fft + out_h) + w1.size + w2.size + w3.size))

    tile_bytes = 4 * ft * (n_fft + out_h) * 2                 # double-buffered in/out blocks
    tmp_bytes = 4 * ft * out_h * 4                            # spec/sq/stage2/mfcc temporaries
    w_bytes = 4 * (w1.size + w2.size + w3.size)
    vmem_limit = int(min(64 * 2 ** 20, max(32 * 2 ** 20, 2 * (tile_bytes + tmp_bytes + w_bytes))))

    return pl.pallas_call(
        kernel,
        out_shape=jax.ShapeDtypeStruct((S, out_h, F), jnp.float32),
        grid=(S, n_fb),
        in_specs=[
            pl.BlockSpec((1, n_fft, ft), lambda s, t: (s, 0, t)),
            pl.BlockSpec(w1.shape, lambda s, t: (0, 0)),      # grid-invariant weights
            pl.BlockSpec(w2.shape, lambda s, t: (0, 0)),
            pl.BlockSpec(w3.shape, lambda s, t: (0, 0)),
        ],
        out_specs=pl.BlockSpec((1, out_h, ft), lambda s, t: (s, 0, t)),
        compiler_params=pltpu.CompilerParams(
            dimension_semantics=("parallel", "parallel"),
            vmem_limit_bytes=vmem_limit),
        cost_estimate=cost,
    )(frames, w1, w2, w3)


# ---------------------------------------------------------------------------
# glue: deltas / cmvn / feature selection (matches torchaudio semantics)
# ---------------------------------------------------------------------------
def compute_deltas(spec, win_length=5):
    # torchaudio.functional.compute_deltas with replicate padding
    n = (win_length - 1) // 2
    denom = n * (n + 1) * (2 * n + 1) / 3.0
    kernel = np.arange(-n, n + 1, dtype=np.float32)
    padded = jnp.pad(spec, [(0, 0)] * (spec.ndim - 1) + [(n, n)], mode='edge')
    T = spec.shape[-1]
    out = jnp.zeros_like(spec)
    for i in range(win_length):
        out = out + kernel[i] * lax.dynamic_slice_in_dim(padded, i, T, axis=-1)
    return out / denom


class OnlinePreprocessorPallas:
    def __init__(self, sample_rate=1600, win_ms=25, hop_ms=10, n_freq=21, n_mels=16,
                 n_mfcc=8, n_mels_mfcc=16, feat_list=None, eps=1e-10, frame_tile=2048):
        self._sample_rate = sample_rate
        self._n_freq = n_freq
        self._n_mels = n_mels
        self._n_mfcc = n_mfcc
        self._n_mels_mfcc = n_mels_mfcc
        self._frame_tile = frame_tile
        win = round(win_ms * sample_rate / 1000)
        hop = round(hop_ms * sample_rate / 1000)
        n_fft = (n_freq - 1) * 2
        self._win, self._hop, self._n_fft = win, hop, n_fft
        self.feat_list = feat_list
        self.eps = eps

        # final sublane placement of the packed kernel output
        self._off_real = 0
        self._off_imag = n_freq
        self._off_pow = 2 * n_freq
        self._off_mel = 3 * n_freq
        self._off_mfcc = 3 * n_freq + n_mels
        used = self._off_mfcc + n_mfcc
        self._out_h = ((used + 7) // 8) * 8                     # 88 for the default config
        assert n_mels_mfcc <= self._off_pow, "internal mel rows must fit under the real|imag region"

        window = hann_window(win)
        mel_fb = melscale_fbanks(n_freq, n_mels, sample_rate)
        # TODO(synk): torchaudio's MFCC uses a 128-band internal mel; scaled to n_mels_mfcc
        # here to keep the synthetic example small (acknowledged mismatch with bit-exactness).
        mel_fb_mfcc = melscale_fbanks(n_freq, n_mels_mfcc, sample_rate)
        dct_mat = create_dct(n_mfcc, n_mels_mfcc)               # (n_mels_mfcc, n_mfcc)
        w1, w2, w3 = build_fused_weights(n_fft, n_freq, window, mel_fb, mel_fb_mfcc, dct_mat,
                                         self._out_h, self._off_pow, self._off_mel, self._off_mfcc)
        self._w1 = jnp.asarray(w1)
        self._w2 = jnp.asarray(w2)
        self._w3 = jnp.asarray(w3)
        # _pseudo_wavs buffer (only used when wavs is None), deterministic init
        self._pseudo_wavs = jax.random.normal(
            jax.random.PRNGKey(42), (N_SAMPLED_PSEUDO_WAV, sample_rate), dtype=jnp.float32)

    # ---- framing (reflect pad + patch extraction; natural (S, n_fft, F) layout) ----
    def _frame(self, flat_wavs):
        pad = self._n_fft // 2
        padded = jnp.pad(flat_wavs, ((0, 0), (pad, pad)), mode='reflect')
        patches = lax.conv_general_dilated_patches(
            padded[:, None, :], filter_shape=(self._n_fft,),
            window_strides=(self._hop,), padding='VALID')       # (S, n_fft, n_frames)
        return patches, patches.shape[-1]

    def _select_feat(self, variables, wavs_len, wav_T, feat_type,
                     channel=-1, log=False, delta=0, cmvn=False):
        raw = variables[feat_type][..., channel, :, :]           # static select on dim -3
        if bool(log):
            raw = jnp.log(raw + self.eps)
        feats = [raw]
        for _ in range(int(delta)):
            feats.append(compute_deltas(feats[-1]))
        feats = jnp.concatenate(feats, axis=-2)
        downsample_rate = wav_T / feats.shape[-1]
        feats_len = [int(round(length / downsample_rate)) for length in wavs_len]
        if bool(cmvn):
            outs = []
            maxlen = max(feats_len)
            for b in range(feats.shape[0]):
                f = feats[b][:, :feats_len[b]]
                m = jnp.mean(f, axis=-1, keepdims=True)
                s = jnp.std(f, axis=-1, keepdims=True, ddof=1)   # torch.std is unbiased
                cm = (f - m) / (s + self.eps)
                outs.append(jnp.pad(cm, ((0, 0), (0, maxlen - cm.shape[-1]))))
            feats = jnp.stack(outs, axis=0)
        return feats

    # ---- forward ---------------------------------------------------------------
    def forward(self, wavs=None, feat_list=None, wavs_len=None):
        feat_list = feat_list if feat_list is not None else self.feat_list
        assert isinstance(feat_list, list)

        if wavs is None:
            max_channel_id = max(int(a.get('channel', 0)) for a in feat_list)
            wavs = jnp.tile(self._pseudo_wavs[0][None, None, :], (1, max_channel_id + 1, 1))
        assert wavs.ndim >= 3
        B, C, T = wavs.shape

        if wavs_len is None:
            wavs_np = np.asarray(wavs)
            wavs_len = []
            for wav_ in wavs_np:
                nz = np.nonzero(wav_)
                wavs_len.append(wav_.shape[-1] if len(nz[0]) == 0 else int(nz[-1].max()) + 1)
            maxlen = max(wavs_len)
            wavs = jnp.stack(
                [jnp.pad(w[:, :l], ((0, 0), (0, maxlen - l)))
                 for w, l in zip(wavs, wavs_len)], axis=0)
            T = maxlen

        wav = wavs[:, :, None, :]                                  # (B, C, 1, T)

        frames, n_frames = self._frame(wavs.reshape(-1, T))        # (B*C, n_fft, F)
        packed = run_stft_features(frames, self._w1, self._w2, self._w3,
                                   self._n_mels_mfcc, self._off_pow,
                                   frame_tile=self._frame_tile)    # (B*C, out_h, F)
        packed = packed.reshape(B, C, self._out_h, n_frames)

        nf, nm, nq = self._n_freq, self._n_mels, self._n_mfcc
        # already in torch's (..., feat, time) layout -> pure sublane-range slices
        real_t = packed[:, :, 0:nf, :]
        imag_t = packed[:, :, nf:2 * nf, :]
        linear = packed[:, :, self._off_pow:self._off_pow + nf, :]     # |Z|^2
        mel_t = packed[:, :, self._off_mel:self._off_mel + nm, :]
        mfcc_t = packed[:, :, self._off_mfcc:self._off_mfcc + nq, :]

        # TODO(synk): phase (atan2) kept in XLA glue; fuse into the kernel's spare sublanes
        # once jnp.arctan2 lowering is confirmed on all target TPU generations.
        phase = jnp.arctan2(imag_t, real_t)
        # torch complx layout: (B, C, 2*n_freq, F) with [real_f, imag_f] interleaved per freq
        complx = jnp.stack([real_t, imag_t], axis=3).reshape(B, C, 2 * nf, n_frames)

        # TODO(synk): original forward overwrites `linear` with a scipy.signal.stft + zscore
        # result (get_stft, normalizing='zscore'); no clean Pallas/JAX equivalent is attempted,
        # the power spectrogram from the kernel is kept instead.
        # TODO(synk): the superlet transform / foi setup and the pdb.set_trace() in the original
        # forward have no runtime effect on the returned features and are omitted.

        variables = {'wav': wav, 'complx': complx, 'linear': linear,
                     'phase': phase, 'mel': mel_t, 'mfcc': mfcc_t}

        results = [self._select_feat(variables, wavs_len, T, **args) for args in feat_list]
        # _transpose_list: swap last two dims -> (B, time, feat)
        return [jnp.swapaxes(r, -1, -2) for r in results]


if __name__ == "__main__":
    key = jax.random.PRNGKey(0)
    B, C, T = 2, 2, 160                      # small: 0.1 s at sample_rate=1600
    pre = OnlinePreprocessorPallas(sample_rate=1600, win_ms=25, hop_ms=10,
                                   n_freq=21, n_mels=16, n_mfcc=8, n_mels_mfcc=16)
    wavs = jax.random.normal(key, (B, C, T), dtype=jnp.float32)

    feat_list = [
        {'feat_type': 'mfcc', 'channel': 0, 'log': False, 'delta': 2, 'cmvn': True},
        {'feat_type': 'mel', 'channel': 0, 'log': True},
        {'feat_type': 'linear', 'channel': 1},
        {'feat_type': 'phase', 'channel': 1},
        {'feat_type': 'complx', 'channel': 0},
    ]

    feats = pre.forward(wavs, feat_list)
    for f in feats:
        jax.block_until_ready(f)

    # sanity on shapes: (B, time, feat_dim)
    assert feats[0].shape == (B, 11, 8 * 3)       # mfcc + 2 deltas
    assert feats[1].shape == (B, 11, 16)          # log-mel
    assert feats[2].shape == (B, 11, 21)          # linear power
    assert feats[3].shape == (B, 11, 21)          # phase
    assert feats[4].shape == (B, 11, 42)          # interleaved real/imag
    # power spectrogram must be (numerically) non-negative
    assert bool(jnp.all(feats[2] > -1e-2))

    print("KERNEL_OK")
</pallas_src>

<mosaic_0001>
module attributes {stable_mosaic.version = 11 : i64} {
  func.func @kernel(%arg0: i32, %arg1: i32, %arg2: memref<1x40x11xf32, #tpu.memory_space<vmem>>, %arg3: memref<88x40xf32, #tpu.memory_space<vmem>>, %arg4: memref<88x88xf32, #tpu.memory_space<vmem>>, %arg5: memref<88x16xf32, #tpu.memory_space<vmem>>, %arg6: memref<1x88x11xf32, #tpu.memory_space<vmem>>) attributes {dimension_semantics = [#tpu.dimension_semantics<parallel>, #tpu.dimension_semantics<parallel>], iteration_bounds = array<i64: 4, 1>, scalar_prefetch = 0 : i64, scratch_operands = 0 : i64, tpu.core_type = #tpu.core_type<tc>, window_params = [{transform_indices = @transform_0, window_bounds = array<i64: 1, 40, 11>}, {pipeline_mode = #tpu.pipeline_mode<synchronous>, transform_indices = @transform_1, window_bounds = array<i64: 88, 40>}, {pipeline_mode = #tpu.pipeline_mode<synchronous>, transform_indices = @transform_2, window_bounds = array<i64: 88, 88>}, {pipeline_mode = #tpu.pipeline_mode<synchronous>, transform_indices = @transform_3, window_bounds = array<i64: 88, 16>}, {transform_indices = @transform_4, window_bounds = array<i64: 1, 88, 11>}]} {
    %c0 = arith.constant 0 : index
    %c0_0 = arith.constant 0 : index
    %c0_1 = arith.constant 0 : index
    %0 = vector.load %arg2[%c0, %c0_0, %c0_1] : memref<1x40x11xf32, #tpu.memory_space<vmem>>, vector<1x40x11xf32>
    %1 = vector.shape_cast %0 : vector<1x40x11xf32> to vector<40x11xf32>
    %c0_2 = arith.constant 0 : index
    %c0_3 = arith.constant 0 : index
    %2 = vector.load %arg3[%c0_2, %c0_3] : memref<88x40xf32, #tpu.memory_space<vmem>>, vector<88x40xf32>
    %cst = arith.constant dense<0.000000e+00> : vector<88x11xf32>
    %3 = tpu.matmul %2, %1, %cst {dimension_numbers = #tpu.dot_dimension_numbers<[1], [0], [0], [1], [0, 0, 1, 1], [], []>} : vector<88x40xf32>, vector<40x11xf32>, vector<88x11xf32> -> vector<88x11xf32>
    %4 = arith.mulf %3, %3 : vector<88x11xf32>
    %c0_4 = arith.constant 0 : index
    %c0_5 = arith.constant 0 : index
    %5 = vector.load %arg4[%c0_4, %c0_5] : memref<88x88xf32, #tpu.memory_space<vmem>>, vector<88x88xf32>
    %cst_6 = arith.constant dense<0.000000e+00> : vector<88x11xf32>
    %6 = tpu.matmul %5, %4, %cst_6 {dimension_numbers = #tpu.dot_dimension_numbers<[1], [0], [0], [1], [0, 0, 1, 1], [], []>} : vector<88x88xf32>, vector<88x11xf32>, vector<88x11xf32> -> vector<88x11xf32>
    %7 = vector.extract_strided_slice %6 {offsets = [0, 0], sizes = [16, 11], strides = [1, 1]} : vector<88x11xf32> to vector<16x11xf32>
    %cst_7 = arith.constant 9.99999997E-7 : f32
    %8 = vector.broadcast %cst_7 : f32 to vector<16x11xf32>
    %9 = arith.addf %7, %8 : vector<16x11xf32>
    %10 = math.log %9 : vector<16x11xf32>
    %c0_8 = arith.constant 0 : index
    %c0_9 = arith.constant 0 : index
    %11 = vector.load %arg5[%c0_8, %c0_9] : memref<88x16xf32, #tpu.memory_space<vmem>>, vector<88x16xf32>
    %cst_10 = arith.constant dense<0.000000e+00> : vector<88x11xf32>
    %12 = tpu.matmul %11, %10, %cst_10 {dimension_numbers = #tpu.dot_dimension_numbers<[1], [0], [0], [1], [0, 0, 1, 1], [], []>} : vector<88x16xf32>, vector<16x11xf32>, vector<88x11xf32> -> vector<88x11xf32>
    %13 = tpu.iota {dimensions = array<i32: 0>} : vector<88x11xi32>
    %c42_i32 = arith.constant 42 : i32
    %14 = vector.broadcast %c42_i32 : i32 to vector<88x11xi32>
    %15 = arith.cmpi slt, %13, %14 : vector<88x11xi32>
    %16 = arith.select %15, %3, %6 : vector<88x11xi1>, vector<88x11xf32>
    %17 = arith.addf %16, %12 : vector<88x11xf32>
    %c0_11 = arith.constant 0 : index
    %c0_12 = arith.constant 0 : index
    %c0_13 = arith.constant 0 : index
    %18 = vector.load %arg6[%c0_11, %c0_12, %c0_13] : memref<1x88x11xf32, #tpu.memory_space<vmem>>, vector<1x88x11xf32>
    %19 = vector.shape_cast %18 : vector<1x88x11xf32> to vector<88x11xf32>
    %20 = vector.shape_cast %17 : vector<88x11xf32> to vector<1x88x11xf32>
    tpu.vector_store %arg6[%c0_11, %c0_12, %c0_13], %20 {strides = array<i32>} : memref<1x88x11xf32, #tpu.memory_space<vmem>>, vector<1x88x11xf32>,
    return
  }
  func.func @transform_0(%arg0: i32, %arg1: i32) -> (i32, i32, i32) {
    %c0_i32 = arith.constant 0 : i32
    %c0_i32_0 = arith.constant 0 : i32
    return %arg0, %c0_i32, %arg1 : i32, i32, i32
  }
  func.func @transform_1(%arg0: i32, %arg1: i32) -> (i32, i32) {
    %c0_i32 = arith.constant 0 : i32
    %c0_i32_0 = arith.constant 0 : i32
    %c0_i32_1 = arith.constant 0 : i32
    return %c0_i32, %c0_i32_0 : i32, i32
  }
  func.func @transform_2(%arg0: i32, %arg1: i32) -> (i32, i32) {
    %c0_i32 = arith.constant 0 : i32
    %c0_i32_0 = arith.constant 0 : i32
    %c0_i32_1 = arith.constant 0 : i32
    return %c0_i32, %c0_i32_0 : i32, i32
  }
  func.func @transform_3(%arg0: i32, %arg1: i32) -> (i32, i32) {
    %c0_i32 = arith.constant 0 : i32
    %c0_i32_0 = arith.constant 0 : i32
    %c0_i32_1 = arith.constant 0 : i32
    return %c0_i32, %c0_i32_0 : i32, i32
  }
  func.func @transform_4(%arg0: i32, %arg1: i32) -> (i32, i32, i32) {
    %c0_i32 = arith.constant 0 : i32
    %c0_i32_0 = arith.constant 0 : i32
    return %arg0, %c0_i32, %arg1 : i32, i32, i32
  }
}

</mosaic_0001>

<llo_original>
// kernel: tpu_custom_call.1
$region0: #{tpu_custom_call.1}
  #allocation0 [shape = 'u32[]', space=smem, size = 0x4, offset = 0x4, fixed_abs, tag = 'smem constant byte address 0x4 - core index']
  #allocation1 [shape = 'u32[72,128]{1,0:T(1,128)}', space=vmem, size = 0x9000, scoped, tag = 'internal scratch']
  %s0 = inlined_call_operand.vmem [shape: f32[4,40,11], index: 0, kind: input, shape index: {}]
  %s1 = inlined_call_operand.vmem [shape: f32[88,40], index: 1, kind: input, shape index: {}]
  %s2 = inlined_call_operand.vmem [shape: f32[88,88], index: 2, kind: input, shape index: {}]
  %s3 = inlined_call_operand.vmem [shape: f32[88,16], index: 3, kind: input, shape index: {}]
  %s4 = inlined_call_operand.vmem [shape: f32[4,88,11], index: 4, kind: output, shape index: {}]
  %s5 = sld [smem:[#allocation0]]
  $region49: #{tpu_custom_call.1} parent=0
    _
  %s7 = ssub.s32 1, %s5
  %s8 = scalar_select 0, %s7, %s5
  loop: start=0, step=1, limit=6
  $region2: #{tpu_custom_call.1} parent=0 // loop_pre_header
    _
  $region3: #{tpu_custom_call.1} parent=0 // loop_header
    %s10 = sphi 0, %s14
    %p11 = scmp.ge.s32.totalorder %s10, 6
    %s17 = sphi 0, %s29
    %s18 = sphi 0, %s25
    %s19 = sphi 0, %s17
    %s20 = sphi 0, %s18
    %s21 = sphi 0, %s19
    %s22 = sphi 0, %s20
    %s34 = sphi 0, %s36
    %s37 = sphi 0, %s34
    %s38 = sphi 0, %s37
    %s54 = sphi 0, %s38
    %s58 = sphi 0, %s58
    %s60 = sphi 0, %s58
    %s61 = sphi 0, %s60
    %s75 = sphi 0, %s61
    %s79 = sphi 0, %s79
    %s81 = sphi 0, %s79
    %s82 = sphi 0, %s81
    %s96 = sphi 0, %s82
    %s100 = sphi 0, %s100
    %s102 = sphi 0, %s100
    %s103 = sphi 0, %s102
    %s117 = sphi 0, %s103
    %s125 = sphi 0, %s127
    %s128 = sphi 0, %s125
    %s129 = sphi 0, %s128
    %s145 = sphi 0, %s129
  $region4: #{tpu_custom_call.1} parent=0 // loop_header_branch
    %13 = sbr.rel (%p11) target = $region8
  $region5: #{tpu_custom_call.1} parent=0 // loop_body
    %s15 = ssub.s32 %s10, 1
    %s16 = ssub.s32 %s10, 2
    %s23 = sadd.s32 1, %s18
    %p24 = scmp.ge.s32.totalorder %s23, 1
    %s25 = scalar_select %p24, 0, %s23
    %s26 = sadd.s32 1, %s17
    %s27 = scalar_select %p24, %s26, %s17
    %p28 = scmp.ge.s32.totalorder %s27, 4
    %s29 = scalar_select %p28, 0, %s27
    %s30 = ssub.s32 %s17, %s29
    %s31 = ssub.s32 %s18, %s25
    %s32 = sor.u32 %s30, %s31
    %p33 = scmp.eq.s32.totalorder %s32, 0
    %s35 = sadd.s32 %s34, 1
    %s36 = scalar_select %p33, %s34, %s35
    %p39 = pneg %p33
    %p40 = scmp.eq.s32.totalorder %s10, 3
    %p41 = por %p39, %p40
    %p42 = scmp.ne.s32.totalorder %s34, %s37
    %p43 = scmp.eq.s32.totalorder %s10, 0
    %p44 = por %p42, %p43
    %p45 = scmp.ne.s32.totalorder %s34, %s37
    %p46 = scmp.eq.s32.totalorder %s15, 3
    %p47 = por %p45, %p46
    %p48 = scmp.ne.s32.totalorder %s37, %s38
    %p49 = scmp.eq.s32.totalorder %s15, 0
    %p50 = por %p48, %p49
    %p51 = scmp.ne.s32.totalorder %s37, %s38
    %p52 = scmp.eq.s32.totalorder %s16, 3
    %p53 = por %p51, %p52
    %p55 = scmp.ne.s32.totalorder %s38, %s54
    %p56 = scmp.eq.s32.totalorder %s16, 0
    %p57 = por %p55, %p56
    %s59 = sadd.s32 %s58, 1
    %p62 = scmp.eq.s32.totalorder %s10, 3
    %p63 = scmp.ne.s32.totalorder %s58, %s60
    %p64 = scmp.eq.s32.totalorder %s10, 0
    %p65 = por %p63, %p64
    %p66 = scmp.ne.s32.totalorder %s58, %s60
    %p67 = scmp.eq.s32.totalorder %s15, 3
    %p68 = por %p66, %p67
    %p69 = scmp.ne.s32.totalorder %s60, %s61
    %p70 = scmp.eq.s32.totalorder %s15, 0
    %p71 = por %p69, %p70
    %p72 = scmp.ne.s32.totalorder %s60, %s61
    %p73 = scmp.eq.s32.totalorder %s16, 3
    %p74 = por %p72, %p73
    %p76 = scmp.ne.s32.totalorder %s61, %s75
    %p77 = scmp.eq.s32.totalorder %s16, 0
    %p78 = por %p76, %p77
    %s80 = sadd.s32 %s79, 1
    %p83 = scmp.eq.s32.totalorder %s10, 3
    %p84 = scmp.ne.s32.totalorder %s79, %s81
    %p85 = scmp.eq.s32.totalorder %s10, 0
    %p86 = por %p84, %p85
    %p87 = scmp.ne.s32.totalorder %s79, %s81
    %p88 = scmp.eq.s32.totalorder %s15, 3
    %p89 = por %p87, %p88
    %p90 = scmp.ne.s32.totalorder %s81, %s82
    %p91 = scmp.eq.s32.totalorder %s15, 0
    %p92 = por %p90, %p91
    %p93 = scmp.ne.s32.totalorder %s81, %s82
    %p94 = scmp.eq.s32.totalorder %s16, 3
    %p95 = por %p93, %p94
    %p97 = scmp.ne.s32.totalorder %s82, %s96
    %p98 = scmp.eq.s32.totalorder %s16, 0
    %p99 = por %p97, %p98
    %s101 = sadd.s32 %s100, 1
    %p104 = scmp.eq.s32.totalorder %s10, 3
    %p105 = scmp.ne.s32.totalorder %s100, %s102
    %p106 = scmp.eq.s32.totalorder %s10, 0
    %p107 = por %p105, %p106
    %p108 = scmp.ne.s32.totalorder %s100, %s102
    %p109 = scmp.eq.s32.totalorder %s15, 3
    %p110 = por %p108, %p109
    %p111 = scmp.ne.s32.totalorder %s102, %s103
    %p112 = scmp.eq.s32.totalorder %s15, 0
    %p113 = por %p111, %p112
    %p114 = scmp.ne.s32.totalorder %s102, %s103
    %p115 = scmp.eq.s32.totalorder %s16, 3
    %p116 = por %p114, %p115
    %p118 = scmp.ne.s32.totalorder %s103, %s117
    %p119 = scmp.eq.s32.totalorder %s16, 0
    %p120 = por %p118, %p119
    %s121 = ssub.s32 %s17, %s29
    %s122 = ssub.s32 %s18, %s25
    %s123 = sor.u32 %s121, %s122
    %p124 = scmp.eq.s32.totalorder %s123, 0
    %s126 = sadd.s32 %s125, 1
    %s127 = scalar_select %p124, %s125, %s126
    %p130 = pneg %p124
    %p131 = scmp.eq.s32.totalorder %s10, 3
    %p132 = por %p130, %p131
    %p133 = scmp.ne.s32.totalorder %s125, %s128
    %p134 = scmp.eq.s32.totalorder %s10, 0
    %p135 = por %p133, %p134
    %p136 = scmp.ne.s32.totalorder %s125, %s128
    %p137 = scmp.eq.s32.totalorder %s15, 3
    %p138 = por %p136, %p137
    %p139 = scmp.ne.s32.totalorder %s128, %s129
    %p140 = scmp.eq.s32.totalorder %s15, 0
    %p141 = por %p139, %p140
    %p142 = scmp.ne.s32.totalorder %s128, %s129
    %p143 = scmp.eq.s32.totalorder %s16, 3
    %p144 = por %p142, %p143
    %p146 = scmp.ne.s32.totalorder %s129, %s145
    %p147 = scmp.eq.s32.totalorder %s16, 0
    %p148 = por %p146, %p147
    %p149 = scmp.le.s32.totalorder 1, %s10
    %p150 = scmp.lt.s32.totalorder %s10, 5
    %p151 = pnand %p149, %p150
    %p152 = pneg %p151
    // Predicated region
    $region9: #{tpu_custom_call.1} parent=5 // pred_check
      _
    $region10: #{tpu_custom_call.1} parent=5 // pred_check_branch
      %154 = sbr.rel (%p151) target = $region12
    $region11: #{tpu_custom_call.1} parent=5 // pred_region
      %s155 = ssub.s32 %s10, 1
      // Predicated region
      $region13: #{tpu_custom_call.1} parent=11 // pred_check
        %p156 = pneg %p71
      $region14: #{tpu_custom_call.1} parent=11 // pred_check_branch
        %158 = sbr.rel (%p156) target = $region16
      $region15: #{tpu_custom_call.1} parent=11 // pred_region
        _
      $region16: #{tpu_custom_call.1} parent=11 // pred_fallthru
        _
      // Predicated region
      $region17: #{tpu_custom_call.1} parent=11 // pred_check
        %p159 = pneg %p92
      $region18: #{tpu_custom_call.1} parent=11 // pred_check_branch
        %161 = sbr.rel (%p159) target = $region20
      $region19: #{tpu_custom_call.1} parent=11 // pred_region
        _
      $region20: #{tpu_custom_call.1} parent=11 // pred_fallthru
        _
      // Predicated region
      $region21: #{tpu_custom_call.1} parent=11 // pred_check
        %p162 = pneg %p113
      $region22: #{tpu_custom_call.1} parent=11 // pred_check_branch
        %164 = sbr.rel (%p162) target = $region24
      $region23: #{tpu_custom_call.1} parent=11 // pred_region
        _
      $region24: #{tpu_custom_call.1} parent=11 // pred_fallthru
        _
    $region12: #{tpu_custom_call.1} parent=5 // pred_fallthru
      _
    %p165 = scmp.lt.s32.totalorder %s10, 4
    // Predicated region
    $region25: #{tpu_custom_call.1} parent=5 // pred_check
      %p166 = pneg %p165
    $region26: #{tpu_custom_call.1} parent=5 // pred_check_branch
      %168 = sbr.rel (%p166) target = $region28
    $region27: #{tpu_custom_call.1} parent=5 // pred_region
      // Predicated region
      $region29: #{tpu_custom_call.1} parent=27 // pred_check
        %p169 = pneg %p44
      $region30: #{tpu_custom_call.1} parent=27 // pred_check_branch
        %171 = sbr.rel (%p169) target = $region32
      $region31: #{tpu_custom_call.1} parent=27 // pred_region
        %p172 = scmp.lt.s32.totalorder %s17, 3
        %s173 = scalar_select %p172, %s17, 3
        %p174 = scmp.lt.s32.totalorder %s18, 0
        %s175 = scalar_select %p174, %s18, 0
        %s176 = smul.addr %s173, 5
        %s177 = sadd.s32 %s175, %s176
        %s178 = smul.addr %s177, 8
        %s179 = scalar_lea.vmem %s0, %s178
      $region32: #{tpu_custom_call.1} parent=27 // pred_fallthru
        _
    $region28: #{tpu_custom_call.1} parent=5 // pred_fallthru
      _
    %p180 = scmp.le.s32.totalorder 1, %s10
    %p181 = scmp.lt.s32.totalorder %s10, 5
    %p182 = pnand %p180, %p181
    %p183 = pneg %p182
    // Predicated region
    $region33: #{tpu_custom_call.1} parent=5 // pred_check
      _
    $region34: #{tpu_custom_call.1} parent=5 // pred_check_branch
      %185 = sbr.rel (%p182) target = $region36
    $region35: #{tpu_custom_call.1} parent=5 // pred_region
      %s186 = ssub.s32 %s10, 1
      %p187 = scmp.lt.s32.totalorder %s19, 3
      %s188 = scalar_select %p187, %s19, 3
      %p189 = scmp.lt.s32.totalorder %s20, 0
      %s190 = scalar_select %p189, %s20, 0
      %s191 = smul.addr %s188, 5
      %s192 = sadd.s32 %s190, %s191
      %s193 = smul.addr %s192, 8
      %s194 = scalar_lea.vmem %s0, %s193
      %p195 = pneg %p50
      %p196 = pneg %p47
      %p197 = pneg %p71
      %p198 = pneg %p68
      %p199 = pneg %p92
      %p200 = pneg %p89
      %p201 = pneg %p113
      %p202 = pneg %p110
      %p203 = pneg %p141
      %p204 = pneg %p138
      %p205 = scmp.lt.s32.totalorder %s19, 3
      %s206 = scalar_select %p205, %s19, 3
      %p207 = scmp.lt.s32.totalorder %s20, 0
      %s208 = scalar_select %p207, %s20, 0
      %s209 = smul.addr %s206, 11
      %s210 = sadd.s32 %s208, %s209
      %s211 = smul.addr %s210, 8
      %s212 = scalar_lea.vmem %s4, %s211
      %p213 = scmp.lt.s32.totalorder %s19, 3
      %s214 = scalar_select %p213, %s19, 3
      %p215 = scmp.lt.s32.totalorder %s20, 0
      %s216 = scalar_select %p215, %s20, 0
      %s217 = smul.addr %s214, 5
      %s218 = sadd.s32 %s216, %s217
      %s219 = smul.addr %s218, 8
      %s220 = scalar_lea.vmem %s0, %s219
      %p221 = scmp.lt.s32.totalorder %s19, 3
      %s222 = scalar_select %p221, %s19, 3
      %p223 = scmp.lt.s32.totalorder %s20, 0
      %s224 = scalar_select %p223, %s20, 0
      %s225 = smul.addr %s222, 11
      %s226 = sadd.s32 %s224, %s225
      %s227 = smul.addr %s226, 8
      %s228 = scalar_lea.vmem %s4, %s227
      %v229 = vld [vmem:[%s220] sm:$0xff]
      %v230 = vld [vmem:[%s220 + $0x8] sm:$0xff]
      %v231 = vld [vmem:[%s220 + $0x10] sm:$0xff]
      %v232 = vld [vmem:[%s220 + $0x18] sm:$0xff]
      %v233 = vld [vmem:[%s220 + $0x20] sm:$0xff]
      %v234 = vld [vmem:[%s1] sm:$0xff]
      %v235 = vld [vmem:[%s1 + $0x8] sm:$0xff]
      %v236 = vld [vmem:[%s1 + $0x10] sm:$0xff]
      %v237 = vld [vmem:[%s1 + $0x18] sm:$0xff]
      %v238 = vld [vmem:[%s1 + $0x20] sm:$0xff]
      %v239 = vld [vmem:[%s1 + $0x28] sm:$0xff]
      %v240 = vld [vmem:[%s1 + $0x30] sm:$0xff]
      %v241 = vld [vmem:[%s1 + $0x38] sm:$0xff]
      %v242 = vld [vmem:[%s1 + $0x40] sm:$0xff]
      %v243 = vld [vmem:[%s1 + $0x48] sm:$0xff]
      %v244 = vld [vmem:[%s1 + $0x50] sm:$0xff]
      %vm245 = vcmask 326656
      %v247 = vsel %vm245, %v234, 0
      %v250 = vsel %vm245, %v235, 0
      %v253 = vsel %vm245, %v236, 0
      %v256 = vsel %vm245, %v237, 0
      %v259 = vsel %vm245, %v238, 0
      %v262 = vsel %vm245, %v239, 0
      %v265 = vsel %vm245, %v240, 0
      %v268 = vsel %vm245, %v241, 0
      %v271 = vsel %vm245, %v242, 0
      %v274 = vsel %vm245, %v243, 0
      %v277 = vsel %vm245, %v244, 0
      %279 = vmatpush.msra.mxu0 0.0
      %280 = vmatpush.msra.mxu0 0.0
      %281 = vmatpush.msra.mxu0 0.0
      %282 = vmatpush.msra.mxu0 0.0
      %283 = vmatpush.msra.mxu0 0.0
      %284 = vmatpush.msra.mxu0 0.0
      %285 = vmatpush.msra.mxu0 0.0
      %286 = vmatpush.msra.mxu0 0.0
      %287 = vmatpush.msra.mxu0 0.0
      %288 = vmatpush.msra.mxu0 0.0
      %289 = vmatpush.msra.mxu0 0.0
      %290 = vmatpush.msra.mxu0 %v233
      %291 = vmatpush.msra.mxu0 %v232
      %292 = vmatpush.msra.mxu0 %v231
      %293 = vmatpush.msra.mxu0 %v230
      %294 = vmatpush.msra.mxu0 %v229
      %295 = vmatmul.f32.gmra.mxu0 %v247
      %v296 = vpop.f32.mrf.mxu0
      %v297 = vadd.f32 0.0, %v296
      %298 = vmatmul.f32.gmra.mxu0 %v250
      %v299 = vpop.f32.mrf.mxu0
      %v300 = vadd.f32 0.0, %v299
      %301 = vmatmul.f32.gmra.mxu0 %v253
      %v302 = vpop.f32.mrf.mxu0
      %v303 = vadd.f32 0.0, %v302
      %304 = vmatmul.f32.gmra.mxu0 %v256
      %v305 = vpop.f32.mrf.mxu0
      %v306 = vadd.f32 0.0, %v305
      %307 = vmatmul.f32.gmra.mxu0 %v259
      %v308 = vpop.f32.mrf.mxu0
      %v309 = vadd.f32 0.0, %v308
      %310 = vmatmul.f32.gmra.mxu0 %v262
      %v311 = vpop.f32.mrf.mxu0
      %v312 = vadd.f32 0.0, %v311
      %313 = vmatmul.f32.gmra.mxu0 %v265
      %v314 = vpop.f32.mrf.mxu0
      %v315 = vadd.f32 0.0, %v314
      %316 = vmatmul.f32.gmra.mxu0 %v268
      %v317 = vpop.f32.mrf.mxu0
      %v318 = vadd.f32 0.0, %v317
      %319 = vmatmul.f32.gmra.mxu0 %v271
      %v320 = vpop.f32.mrf.mxu0
      %v321 = vadd.f32 0.0, %v320
      %322 = vmatmul.f32.gmra.mxu0 %v274
      %v323 = vpop.f32.mrf.mxu0
      %v324 = vadd.f32 0.0, %v323
      %325 = vmatmul.f32.gmra.mxu0 %v277
      %v326 = vpop.f32.mrf.mxu0
      %v327 = vadd.f32 0.0, %v326
      %328 = vdwg.mxu0
      %v329 = vmul.f32 %v297, %v297
      %v330 = vmul.f32 %v300, %v300
      %v331 = vmul.f32 %v303, %v303
      %v332 = vmul.f32 %v306, %v306
      %v333 = vmul.f32 %v309, %v309
      %v334 = vmul.f32 %v312, %v312
      %v335 = vmul.f32 %v315, %v315
      %v336 = vmul.f32 %v318, %v318
      %v337 = vmul.f32 %v321, %v321
      %v338 = vmul.f32 %v324, %v324
      %v339 = vmul.f32 %v327, %v327
      %v340 = vld [vmem:[%s2] sm:$0xff]
      %v341 = vld [vmem:[%s2 + $0x8] sm:$0xff]
      %v342 = vld [vmem:[%s2 + $0x10] sm:$0xff]
      %v343 = vld [vmem:[%s2 + $0x18] sm:$0xff]
      %v344 = vld [vmem:[%s2 + $0x20] sm:$0xff]
      %v345 = vld [vmem:[%s2 + $0x28] sm:$0xff]
      %v346 = vld [vmem:[%s2 + $0x30] sm:$0xff]
      %v347 = vld [vmem:[%s2 + $0x38] sm:$0xff]
      %v348 = vld [vmem:[%s2 + $0x40] sm:$0xff]
      %v349 = vld [vmem:[%s2 + $0x48] sm:$0xff]
      %v350 = vld [vmem:[%s2 + $0x50] sm:$0xff]
      %vm351 = vcmask 719872
      %v353 = vsel %vm351, %v340, 0
      %v356 = vsel %vm351, %v341, 0
      %v359 = vsel %vm351, %v342, 0
      %v362 = vsel %vm351, %v343, 0
      %v365 = vsel %vm351, %v344, 0
      %v368 = vsel %vm351, %v345, 0
      %v371 = vsel %vm351, %v346, 0
      %v374 = vsel %vm351, %v347, 0
      %v377 = vsel %vm351, %v348, 0
      %v380 = vsel %vm351, %v349, 0
      %v383 = vsel %vm351, %v350, 0
      %385 = vmatpush.msra.mxu0 0.0
      %386 = vmatpush.msra.mxu0 0.0
      %387 = vmatpush.msra.mxu0 0.0
      %388 = vmatpush.msra.mxu0 0.0
      %389 = vmatpush.msra.mxu0 0.0
      %390 = vmatpush.msra.mxu0 %v339
      %391 = vmatpush.msra.mxu0 %v338
      %392 = vmatpush.msra.mxu0 %v337
      %393 = vmatpush.msra.mxu0 %v336
      %394 = vmatpush.msra.mxu0 %v335
      %395 = vmatpush.msra.mxu0 %v334
      %396 = vmatpush.msra.mxu0 %v333
      %397 = vmatpush.msra.mxu0 %v332
      %398 = vmatpush.msra.mxu0 %v331
      %399 = vmatpush.msra.mxu0 %v330
      %400 = vmatpush.msra.mxu0 %v329
      %401 = vmatmul.f32.gmra.mxu0 %v353
      %v402 = vpop.f32.mrf.mxu0
      %v403 = vadd.f32 0.0, %v402
      %404 = vmatmul.f32.gmra.mxu0 %v356
      %v405 = vpop.f32.mrf.mxu0
      %v406 = vadd.f32 0.0, %v405
      %407 = vmatmul.f32.gmra.mxu0 %v359
      %v408 = vpop.f32.mrf.mxu0
      %v409 = vadd.f32 0.0, %v408
      %410 = vmatmul.f32.gmra.mxu0 %v362
      %v411 = vpop.f32.mrf.mxu0
      %v412 = vadd.f32 0.0, %v411
      %413 = vmatmul.f32.gmra.mxu0 %v365
      %v414 = vpop.f32.mrf.mxu0
      %v415 = vadd.f32 0.0, %v414
      %416 = vmatmul.f32.gmra.mxu0 %v368
      %v417 = vpop.f32.mrf.mxu0
      %v418 = vadd.f32 0.0, %v417
      %419 = vmatmul.f32.gmra.mxu0 %v371
      %v420 = vpop.f32.mrf.mxu0
      %v421 = vadd.f32 0.0, %v420
      %422 = vmatmul.f32.gmra.mxu0 %v374
      %v423 = vpop.f32.mrf.mxu0
      %v424 = vadd.f32 0.0, %v423
      %425 = vmatmul.f32.gmra.mxu0 %v377
      %v426 = vpop.f32.mrf.mxu0
      %v427 = vadd.f32 0.0, %v426
      %428 = vmatmul.f32.gmra.mxu0 %v380
      %v429 = vpop.f32.mrf.mxu0
      %v430 = vadd.f32 0.0, %v429
      %431 = vmatmul.f32.gmra.mxu0 %v383
      %v432 = vpop.f32.mrf.mxu0
      %v433 = vadd.f32 0.0, %v432
      %434 = vdwg.mxu0
      %v435 = vadd.f32 %v403, 1e-06
      %v436 = vadd.f32 %v406, 1e-06
      %v437 = vlog2.pop %v435
      %v438 = vmul.f32 %v437, 0.6931472
      %v439 = vlog2.pop %v436
      %v440 = vmul.f32 %v439, 0.6931472
      %v441 = vld [vmem:[%s3] sm:$0xff]
      %v442 = vld [vmem:[%s3 + $0x8] sm:$0xff]
      %v443 = vld [vmem:[%s3 + $0x10] sm:$0xff]
      %v444 = vld [vmem:[%s3 + $0x18] sm:$0xff]
      %v445 = vld [vmem:[%s3 + $0x20] sm:$0xff]
      %v446 = vld [vmem:[%s3 + $0x28] sm:$0xff]
      %v447 = vld [vmem:[%s3 + $0x30] sm:$0xff]
      %v448 = vld [vmem:[%s3 + $0x38] sm:$0xff]
      %v449 = vld [vmem:[%s3 + $0x40] sm:$0xff]
      %v450 = vld [vmem:[%s3 + $0x48] sm:$0xff]
      %v451 = vld [vmem:[%s3 + $0x50] sm:$0xff]
      %vm452 = vcmask 130048
      %v454 = vsel %vm452, %v441, 0
      %v457 = vsel %vm452, %v442, 0
      %v460 = vsel %vm452, %v443, 0
      %v463 = vsel %vm452, %v444, 0
      %v466 = vsel %vm452, %v445, 0
      %v469 = vsel %vm452, %v446, 0
      %v472 = vsel %vm452, %v447, 0
      %v475 = vsel %vm452, %v448, 0
      %v478 = vsel %vm452, %v449, 0
      %v481 = vsel %vm452, %v450, 0
      %v484 = vsel %vm452, %v451, 0
      %486 = vmatpush.msra.mxu0 0.0
      %487 = vmatpush.msra.mxu0 0.0
      %488 = vmatpush.msra.mxu0 0.0
      %489 = vmatpush.msra.mxu0 0.0
      %490 = vmatpush.msra.mxu0 0.0
      %491 = vmatpush.msra.mxu0 0.0
      %492 = vmatpush.msra.mxu0 0.0
      %493 = vmatpush.msra.mxu0 0.0
      %494 = vmatpush.msra.mxu0 0.0
      %495 = vmatpush.msra.mxu0 0.0
      %496 = vmatpush.msra.mxu0 0.0
      %497 = vmatpush.msra.mxu0 0.0
      %498 = vmatpush.msra.mxu0 0.0
      %499 = vmatpush.msra.mxu0 0.0
      %500 = vmatpush.msra.mxu0 %v440
      %501 = vmatpush.msra.mxu0 %v438
      %502 = vmatmul.f32.gmra.mxu0 %v454
      %v503 = vpop.f32.mrf.mxu0
      %v504 = vadd.f32 0.0, %v503
      %505 = vmatmul.f32.gmra.mxu0 %v457
      %v506 = vpop.f32.mrf.mxu0
      %v507 = vadd.f32 0.0, %v506
      %508 = vmatmul.f32.gmra.mxu0 %v460
      %v509 = vpop.f32.mrf.mxu0
      %v510 = vadd.f32 0.0, %v509
      %511 = vmatmul.f32.gmra.mxu0 %v463
      %v512 = vpop.f32.mrf.mxu0
      %v513 = vadd.f32 0.0, %v512
      %514 = vmatmul.f32.gmra.mxu0 %v466
      %v515 = vpop.f32.mrf.mxu0
      %v516 = vadd.f32 0.0, %v515
      %517 = vmatmul.f32.gmra.mxu0 %v469
      %v518 = vpop.f32.mrf.mxu0
      %v519 = vadd.f32 0.0, %v518
      %520 = vmatmul.f32.gmra.mxu0 %v472
      %v521 = vpop.f32.mrf.mxu0
      %v522 = vadd.f32 0.0, %v521
      %523 = vmatmul.f32.gmra.mxu0 %v475
      %v524 = vpop.f32.mrf.mxu0
      %v525 = vadd.f32 0.0, %v524
      %526 = vmatmul.f32.gmra.mxu0 %v478
      %v527 = vpop.f32.mrf.mxu0
      %v528 = vadd.f32 0.0, %v527
      %529 = vmatmul.f32.gmra.mxu0 %v481
      %v530 = vpop.f32.mrf.mxu0
      %v531 = vadd.f32 0.0, %v530
      %532 = vmatmul.f32.gmra.mxu0 %v484
      %v533 = vpop.f32.mrf.mxu0
      %v534 = vadd.f32 0.0, %v533
      %535 = vdwg.mxu0
      %v536 = vlaneseq
      %v537 = vshrl.u32 %v536, 7
      %v538 = vadd.s32 %v537, 8
      %v539 = vadd.s32 %v537, 16
      %v540 = vadd.s32 %v537, 24
      %v541 = vadd.s32 %v537, 32
      %v542 = vadd.s32 %v537, 40
      %v543 = vadd.s32 %v537, 48
      %v544 = vadd.s32 %v537, 56
      %v545 = vadd.s32 %v537, 64
      %v546 = vadd.s32 %v537, 72
      %v547 = vadd.s32 %v537, 80
      %vm548 = vcmp.lt.s32.totalorder %v537, 42
      %vm549 = vcmp.lt.s32.totalorder %v538, 42
      %vm550 = vcmp.lt.s32.totalorder %v539, 42
      %vm551 = vcmp.lt.s32.totalorder %v540, 42
      %vm552 = vcmp.lt.s32.totalorder %v541, 42
      %vm553 = vcmp.lt.s32.totalorder %v542, 42
      %vm554 = vcmp.lt.s32.totalorder %v543, 42
      %vm555 = vcmp.lt.s32.totalorder %v544, 42
      %vm556 = vcmp.lt.s32.totalorder %v545, 42
      %vm557 = vcmp.lt.s32.totalorder %v546, 42
      %vm558 = vcmp.lt.s32.totalorder %v547, 42
      %v559 = vsel %vm548, %v297, %v403
      %v560 = vsel %vm549, %v300, %v406
      %v561 = vsel %vm550, %v303, %v409
      %v562 = vsel %vm551, %v306, %v412
      %v563 = vsel %vm552, %v309, %v415
      %v564 = vsel %vm553, %v312, %v418
      %v565 = vsel %vm554, %v315, %v421
      %v566 = vsel %vm555, %v318, %v424
      %v567 = vsel %vm556, %v321, %v427
      %v568 = vsel %vm557, %v324, %v430
      %v569 = vsel %vm558, %v327, %v433
      %v570 = vadd.f32 %v559, %v504
      %v571 = vadd.f32 %v560, %v507
      %v572 = vadd.f32 %v561, %v510
      %v573 = vadd.f32 %v562, %v513
      %v574 = vadd.f32 %v563, %v516
      %v575 = vadd.f32 %v564, %v519
      %v576 = vadd.f32 %v565, %v522
      %v577 = vadd.f32 %v566, %v525
      %v578 = vadd.f32 %v567, %v528
      %v579 = vadd.f32 %v568, %v531
      %v580 = vadd.f32 %v569, %v534
      %vm581 = vcmask 89088
      %582 = vst.msk [vmem:[%s228] sm:$0xff] %vm581, %v570
      %583 = vst.msk [vmem:[%s228 + $0x8] sm:$0xff] %vm581, %v571
      %584 = vst.msk [vmem:[%s228 + $0x10] sm:$0xff] %vm581, %v572
      %585 = vst.msk [vmem:[%s228 + $0x18] sm:$0xff] %vm581, %v573
      %586 = vst.msk [vmem:[%s228 + $0x20] sm:$0xff] %vm581, %v574
      %587 = vst.msk [vmem:[%s228 + $0x28] sm:$0xff] %vm581, %v575
      %588 = vst.msk [vmem:[%s228 + $0x30] sm:$0xff] %vm581, %v576
      %589 = vst.msk [vmem:[%s228 + $0x38] sm:$0xff] %vm581, %v577
      %590 = vst.msk [vmem:[%s228 + $0x40] sm:$0xff] %vm581, %v578
      %591 = vst.msk [vmem:[%s228 + $0x48] sm:$0xff] %vm581, %v579
      %592 = vst.msk [vmem:[%s228 + $0x50] sm:$0xff] %vm581, %v580
      %p593 = scmp.lt.s32.totalorder %s19, 3
      %s594 = scalar_select %p593, %s19, 3
      %p595 = scmp.lt.s32.totalorder %s20, 0
      %s596 = scalar_select %p595, %s20, 0
      %s597 = smul.addr %s594, 11
      %s598 = sadd.s32 %s596, %s597
      %s599 = smul.addr %s598, 8
      %s600 = scalar_lea.vmem %s4, %s599
      // Predicated region
      $region37: #{tpu_custom_call.1} parent=35 // pred_check
        %p601 = pneg %p138
      $region38: #{tpu_custom_call.1} parent=35 // pred_check_branch
        %603 = sbr.rel (%p601) target = $region40
      $region39: #{tpu_custom_call.1} parent=35 // pred_region
        _
      $region40: #{tpu_custom_call.1} parent=35 // pred_fallthru
        _
    $region36: #{tpu_custom_call.1} parent=5 // pred_fallthru
      _
    %p604 = scmp.le.s32.totalorder 2, %s10
    // Predicated region
    $region41: #{tpu_custom_call.1} parent=5 // pred_check
      %p605 = pneg %p604
    $region42: #{tpu_custom_call.1} parent=5 // pred_check_branch
      %607 = sbr.rel (%p605) target = $region44
    $region43: #{tpu_custom_call.1} parent=5 // pred_region
      %s608 = ssub.s32 %s10, 2
      // Predicated region
      $region45: #{tpu_custom_call.1} parent=43 // pred_check
        %p609 = pneg %p144
      $region46: #{tpu_custom_call.1} parent=43 // pred_check_branch
        %611 = sbr.rel (%p609) target = $region48
      $region47: #{tpu_custom_call.1} parent=43 // pred_region
        %p612 = scmp.lt.s32.totalorder %s21, 3
        %s613 = scalar_select %p612, %s21, 3
        %p614 = scmp.lt.s32.totalorder %s22, 0
        %s615 = scalar_select %p614, %s22, 0
        %s616 = smul.addr %s613, 11
        %s617 = sadd.s32 %s615, %s616
        %s618 = smul.addr %s617, 8
        %s619 = scalar_lea.vmem %s4, %s618
      $region48: #{tpu_custom_call.1} parent=43 // pred_fallthru
        _
    $region44: #{tpu_custom_call.1} parent=5 // pred_fallthru
      _
  $region6: #{tpu_custom_call.1} parent=0 // loop_footer
    %s14 = sadd.s32 1, %s10
  $region7: #{tpu_custom_call.1} parent=0 // loop_footer_branch
    %9 = sbr.rel target = $region3
  $region8: #{tpu_custom_call.1} parent=0 // loop_exit
    _

</llo_original>
